<compile_context>
chip_gen: v6e
topology: v6e:2x2x1
jax: 0.10.0
libtpu: 0.0.40
codegen_flags: <defaults>
</compile_context>

<pallas_src>
import jax
import jax.numpy as jnp
from jax.experimental import pallas as pl
from jax.experimental.pallas import tpu as pltpu

# NOTE: PI is intentionally the truncated constant from the PyTorch reference
# (pi = 3.14159), NOT math.pi.
PI = 3.14159
SQRT_2PI = (2.0 * PI) ** 0.5
INV_SQRT2 = 0.5 ** 0.5


def gaussian_kernel(x_ref, p_ref, o_ref):
    # x_ref: (tn, 1)  current row-tile of x
    # p_ref: (3, K)   packed params, grid-invariant (resident in VMEM):
    #                 row 0 = mean, row 1 = (1/sqrt(2))/std, row 2 = 1/(sqrt(2*pi)*std)
    # o_ref: (tn, K)
    x = x_ref[...]                           # (tn, 1) f32
    mean = p_ref[0:1, :]                     # (1, K)  static ref slices are free
    inv_std_s = p_ref[1:2, :]                # (1, K)
    coef = p_ref[2:3, :]                     # (1, K)
    t = (x - mean) * inv_std_s               # broadcast -> (tn, K), VALU
    # exp is the single EUP op per element; the scales are VALU multiplies.
    o_ref[...] = (jnp.exp(-(t * t)) * coef).astype(o_ref.dtype)


def _pick_tile_n(N, K, tile_n):
    """Row tile: multiple of 8, VMEM-budgeted, >=2 grid steps for large inputs."""
    n8 = max(8, ((N + 7) // 8) * 8)
    if tile_n is None:
        try:
            vmem_phys = int(pltpu.get_tpu_info().vmem_capacity_bytes)
        except Exception:
            vmem_phys = 64 << 20              # conservative (v7x per-TC) fallback
        # Per-row, double-buffered cost: lane-padded (tn,1) x tile (128 lanes * 4 B)
        # plus the (tn, K) f32 output tile.
        per_row = 2 * (128 * 4 + K * 4)
        budget = min(vmem_phys // 4, 16 << 20)
        tile_n = budget // per_row            # -> 8192 rows (4 MiB out block) at K=128
    tn = max(8, (int(tile_n) // 8) * 8)
    tn = min(tn, n8)
    # If a large input would be a single block, split so the "parallel" row axis
    # has >= 2 steps and can shard across v7x's two TensorCores.
    if tn >= n8 and n8 >= 4096:
        tn = max(8, (((n8 + 1) // 2 + 7) // 8) * 8)
    return tn


def gaussian_layer(x, means_w, stds_w, *, tile_n=None, out_dtype=jnp.float32):
    """x: (N, 1); means_w, stds_w: (1, K). Returns (N, K) in out_dtype (default f32)."""
    N = x.shape[0]
    K = means_w.shape[-1]

    # --- Hoisted, one-time parameter math over a (1, K) vector, packed (3, K). ---
    std = jnp.abs(stds_w.reshape(1, K).astype(jnp.float32)) + 1e-5
    inv_std = 1.0 / std
    params = jnp.concatenate(
        [
            means_w.reshape(1, K).astype(jnp.float32),   # mean
            inv_std * INV_SQRT2,                         # folds the -0.5 of the exponent
            inv_std * (1.0 / SQRT_2PI),                  # 1 / (sqrt(2*pi) * std)
        ],
        axis=0,
    )                                                    # (3, K)

    x32 = x.reshape(N, 1).astype(jnp.float32)

    tn = _pick_tile_n(N, K, tile_n)
    grid = (pl.cdiv(N, tn),)                 # ragged last block handled by Pallas

    # Scoped-VMEM need: double-buffered output tile + lane-padded x tile
    # (tn*512 B each per buffer at K=128) + the small resident packed params.
    vmem_needed = 2 * (tn * 128 * 4 + tn * K * 4) + 2 * 8 * ((K + 127) // 128) * 128 * 4
    vmem_limit = max(int(vmem_needed) + (4 << 20), 32 << 20)   # headroom; >= v6e default

    cost = pl.CostEstimate(
        flops=4 * N * K,                     # sub + 3 muls per element
        transcendentals=N * K,               # one exp per element
        bytes_accessed=N * K * 4 + N * 4 + 3 * K * 4,
    )

    out = pl.pallas_call(
        gaussian_kernel,
        out_shape=jax.ShapeDtypeStruct((N, K), out_dtype),
        grid_spec=pltpu.PrefetchScalarGridSpec(
            num_scalar_prefetch=0,
            grid=grid,
            in_specs=[
                pl.BlockSpec((tn, 1), lambda i: (i, 0)),   # x row tile
                pl.BlockSpec((3, K), lambda i: (0, 0)),    # packed params (resident)
            ],
            out_specs=pl.BlockSpec((tn, K), lambda i: (i, 0)),
        ),
        compiler_params=pltpu.CompilerParams(
            dimension_semantics=("parallel",),   # shard row-grid across TCs (v7x)
            vmem_limit_bytes=vmem_limit,
        ),
        cost_estimate=cost,
    )(x32, params)

    return out


def gaussian_ref(x, means_w, stds_w):
    """Pure-JAX reference mirroring the PyTorch forward."""
    K = means_w.shape[-1]
    xe = jnp.broadcast_to(x.astype(jnp.float32), (x.shape[0], K))
    mean = means_w.reshape(-1).astype(jnp.float32)
    std = jnp.abs(stds_w.reshape(-1).astype(jnp.float32)) + 1e-5
    return jnp.exp(-0.5 * ((xe - mean) / std) ** 2) / (SQRT_2PI * std)


if __name__ == "__main__":
    K = 128  # module default
    N = 8    # small "sequence" of scalar inputs

    key = jax.random.PRNGKey(0)
    kx, km, ks = jax.random.split(key, 3)

    # Deterministic parameter init matching nn.init.uniform_(w, 0, 3)
    means_w = jax.random.uniform(km, (1, K), jnp.float32, minval=0.0, maxval=3.0)
    stds_w = jax.random.uniform(ks, (1, K), jnp.float32, minval=0.0, maxval=3.0)

    # Input: (N, 1) scalar features, expanded to (N, K) inside forward
    x = jax.random.normal(kx, (N, 1), jnp.float32)

    out = jax.block_until_ready(gaussian_layer(x, means_w, stds_w))
    ref = gaussian_ref(x, means_w, stds_w)
    assert out.shape == (N, K) and out.dtype == jnp.float32
    assert jnp.allclose(out, ref, rtol=1e-5, atol=1e-6), "mismatch vs reference"

    # Ragged-N / multi-step-grid path: 300 rows, 128-row tiles -> grid=3 with a
    # masked last block (no pad + slice round trip).
    N2 = 300
    x2 = jax.random.normal(jax.random.PRNGKey(1), (N2, 1), jnp.float32)
    out2 = jax.block_until_ready(gaussian_layer(x2, means_w, stds_w, tile_n=128))
    ref2 = gaussian_ref(x2, means_w, stds_w)
    assert out2.shape == (N2, K)
    assert jnp.allclose(out2, ref2, rtol=1e-5, atol=1e-6), "mismatch vs reference (ragged)"

    print("KERNEL_OK")
</pallas_src>

<mosaic_0001>
module attributes {stable_mosaic.version = 11 : i64} {
  func.func @gaussian_kernel(%arg0: i32, %arg1: memref<8x1xf32, #tpu.memory_space<vmem>>, %arg2: memref<3x128xf32, #tpu.memory_space<vmem>>, %arg3: memref<8x128xf32, #tpu.memory_space<vmem>>) attributes {dimension_semantics = [#tpu.dimension_semantics<parallel>], iteration_bounds = array<i64: 1>, scalar_prefetch = 0 : i64, scratch_operands = 0 : i64, tpu.core_type = #tpu.core_type<tc>, window_params = [{transform_indices = @transform_0, window_bounds = array<i64: 8, 1>}, {pipeline_mode = #tpu.pipeline_mode<synchronous>, transform_indices = @transform_1, window_bounds = array<i64: 3, 128>}, {transform_indices = @transform_2, window_bounds = array<i64: 8, 128>}]} {
    %c0 = arith.constant 0 : index
    %c0_0 = arith.constant 0 : index
    %0 = vector.load %arg1[%c0, %c0_0] : memref<8x1xf32, #tpu.memory_space<vmem>>, vector<8x1xf32>
    %c0_1 = arith.constant 0 : index
    %c0_2 = arith.constant 0 : index
    %1 = vector.load %arg2[%c0_1, %c0_2] : memref<3x128xf32, #tpu.memory_space<vmem>>, vector<1x128xf32>
    %c1 = arith.constant 1 : index
    %c0_3 = arith.constant 0 : index
    %2 = vector.load %arg2[%c1, %c0_3] : memref<3x128xf32, #tpu.memory_space<vmem>>, vector<1x128xf32>
    %c2 = arith.constant 2 : index
    %c0_4 = arith.constant 0 : index
    %3 = vector.load %arg2[%c2, %c0_4] : memref<3x128xf32, #tpu.memory_space<vmem>>, vector<1x128xf32>
    %4 = vector.broadcast %0 : vector<8x1xf32> to vector<8x128xf32>
    %5 = vector.broadcast %1 : vector<1x128xf32> to vector<8x128xf32>
    %6 = arith.subf %4, %5 : vector<8x128xf32>
    %7 = vector.broadcast %2 : vector<1x128xf32> to vector<8x128xf32>
    %8 = arith.mulf %6, %7 : vector<8x128xf32>
    %9 = arith.mulf %8, %8 : vector<8x128xf32>
    %cst = arith.constant 0.000000e+00 : f32
    %10 = vector.broadcast %cst : f32 to vector<8x128xf32>
    %11 = arith.subf %10, %9 : vector<8x128xf32>
    %12 = math.exp %11 : vector<8x128xf32>
    %13 = vector.broadcast %3 : vector<1x128xf32> to vector<8x128xf32>
    %14 = arith.mulf %12, %13 : vector<8x128xf32>
    %c0_5 = arith.constant 0 : index
    %c0_6 = arith.constant 0 : index
    %15 = vector.load %arg3[%c0_5, %c0_6] : memref<8x128xf32, #tpu.memory_space<vmem>>, vector<8x128xf32>
    tpu.vector_store %arg3[%c0_5, %c0_6], %14 {strides = array<i32>} : memref<8x128xf32, #tpu.memory_space<vmem>>, vector<8x128xf32>,
    return
  }
  func.func @transform_0(%arg0: i32) -> (i32, i32) {
    %c0_i32 = arith.constant 0 : i32
    %c0_i32_0 = arith.constant 0 : i32
    return %arg0, %c0_i32 : i32, i32
  }
  func.func @transform_1(%arg0: i32) -> (i32, i32) {
    %c0_i32 = arith.constant 0 : i32
    %c0_i32_0 = arith.constant 0 : i32
    %c0_i32_1 = arith.constant 0 : i32
    return %c0_i32, %c0_i32_0 : i32, i32
  }
  func.func @transform_2(%arg0: i32) -> (i32, i32) {
    %c0_i32 = arith.constant 0 : i32
    %c0_i32_0 = arith.constant 0 : i32
    return %arg0, %c0_i32 : i32, i32
  }
}

</mosaic_0001>

<llo_original>
// kernel: tpu_custom_call.1
$region0: #{tpu_custom_call.1}
  #allocation0 [shape = 'u32[]', space=smem, size = 0x4, offset = 0x4, fixed_abs, tag = 'smem constant byte address 0x4 - core index']
  #allocation1 [shape = 'u32[144,128]{1,0:T(1,128)}', space=vmem, size = 0x12000, scoped, tag = 'internal scratch']
  %s0 = inlined_call_operand.vmem [shape: f32[8,1], index: 0, kind: input, shape index: {}]
  %s1 = inlined_call_operand.vmem [shape: f32[3,128], index: 1, kind: input, shape index: {}]
  %s2 = inlined_call_operand.hbm [shape: f32[8,128], index: 2, kind: output, shape index: {}]
  %s3 = sld [smem:[#allocation0]]
  $region18: #{tpu_custom_call.1} parent=0
    _
  %s5 = ssub.s32 1, %s3
  %s6 = scalar_select 0, %s5, %s3
  $region1: #{tpu_custom_call.1} parent=0
    #allocation2 [shape = 'u8[4096]{0}', space=vmem, size = 0x1000, scoped, tag = 'output window, operand 0, single buffered']
    #allocation3 [shape = 's32[1]{0}', space=sflag, size = 0x4, scoped, tag = 'scoped memory for tpu_custom_call.1']
    %7 = vsyncpa [#allocation3], 0
    // Predicated region
    $region2: #{tpu_custom_call.1} parent=1 // pred_check
      _
    $region3: #{tpu_custom_call.1} parent=1 // pred_check_branch
      %9 = sbr.rel (0) target = $region5
    $region4: #{tpu_custom_call.1} parent=1 // pred_region
      _
    $region5: #{tpu_custom_call.1} parent=1 // pred_fallthru
      _
    // Predicated region
    $region6: #{tpu_custom_call.1} parent=1 // pred_check
      _
    $region7: #{tpu_custom_call.1} parent=1 // pred_check_branch
      %11 = sbr.rel (0) target = $region9
    $region8: #{tpu_custom_call.1} parent=1 // pred_region
      _
    $region9: #{tpu_custom_call.1} parent=1 // pred_fallthru
      _
    %v12 = vld [vmem:[%s0] sm:$0xff]
    %v13 = vld [vmem:[%s1] sm:$0x1]
    %v14 = vld [vmem:[%s1 + $0x1] sm:$0x1]
    %v15 = vld [vmem:[%s1 + $0x2] sm:$0x1]
    %17 = vset.pattern.permute.xlu0 0
    %18 = vperm.xlu0 %17, %v12
    %v19 = vpop.permute.xlu0 %18
    %v21 = vlaneseq
    %v22 = vshrl.u32 %v21, 7
    %v23 = vsub.s32 0, %v22
    %v24 = vrot.slane %v13, %v23
    %v25 = vsub.f32 %v19, %v24
    %v26 = vlaneseq
    %v27 = vshrl.u32 %v26, 7
    %v28 = vsub.s32 0, %v27
    %v29 = vrot.slane %v14, %v28
    %v30 = vmul.f32 %v25, %v29
    %v31 = vmul.f32 %v30, %v30
    %v32 = vsub.f32 0.0, %v31
    %v33 = vmul.f32 %v32, 1.442695
    %v34 = vpow.pop %v33
    %v35 = vlaneseq
    %v36 = vshrl.u32 %v35, 7
    %v37 = vsub.s32 0, %v36
    %v38 = vrot.slane %v15, %v37
    %v39 = vmul.f32 %v34, %v38
    %40 = vst [vmem:[#allocation2] sm:$0xff] %v39
    // Predicated region
    $region10: #{tpu_custom_call.1} parent=1 // pred_check
      _
    $region11: #{tpu_custom_call.1} parent=1 // pred_check_branch
      %42 = sbr.rel (0) target = $region13
    $region12: #{tpu_custom_call.1} parent=1 // pred_region
      %s44 = ssub.s32 128, 128
      %45 = vsyncadd [#allocation3], %s44
      %s47 = sshll.u32 [#allocation2], 4
      %s48 = int_to_ptr.vmem [resolvable:$true] %s47
      %50 = dma.vmem_to_hbm [thread:$0]  %s48, 128, %s2, [#allocation3]
    $region13: #{tpu_custom_call.1} parent=1 // pred_fallthru
      _
    // Predicated region
    $region14: #{tpu_custom_call.1} parent=1 // pred_check
      _
    $region15: #{tpu_custom_call.1} parent=1 // pred_check_branch
      %52 = sbr.rel (0) target = $region17
    $region16: #{tpu_custom_call.1} parent=1 // pred_region
      %53 = dma.done [#allocation3], 128
    $region17: #{tpu_custom_call.1} parent=1 // pred_fallthru
      _
    %54 = vsyncpa [#allocation3], 1

</llo_original>
